<compile_context>
chip_gen: v6e
topology: v6e:2x2x1
jax: 0.10.0
libtpu: 0.0.40
codegen_flags: <defaults>
</compile_context>

<pallas_src>
from functools import partial

import jax
import jax.numpy as jnp
from jax.experimental import pallas as pl
from jax.experimental.pallas import tpu as pltpu


_TARGET_BLOCK_BYTES = 1 << 20   # aim for >= ~1 MiB per grid-step block
_MIN_GRID_STEPS = 4             # keep the pipeline / both v7x TCs busy


def _vmem_limit_cap():
    """Generation-aware scoped-VMEM cap (v5e/v6e: 128 MiB phys, v7x: 64 MiB)."""
    try:
        cap = int(pltpu.get_tpu_info().vmem_capacity_bytes)
    except Exception:
        cap = 64 << 20
    return max(32 << 20, min((cap * 3) // 4, cap - (8 << 20)))


def _compiler_params(dimension_semantics, vmem_bytes_needed, limit_cap):
    limit = int(min(limit_cap, max(32 << 20, vmem_bytes_needed + (4 << 20))))
    return pltpu.CompilerParams(dimension_semantics=dimension_semantics,
                                vmem_limit_bytes=limit)


def _pick_batch_fold(n, per_image_bytes, budget_bytes, min_steps):
    """Largest useful divisor nb of n: reach ~1 MiB blocks, keep >= min_steps grid
    steps, and keep the double-buffered in+out blocks (4*nb*img) inside budget."""
    max_nb_budget = max(1, budget_bytes // max(1, 4 * per_image_bytes))
    max_nb_steps = max(1, n // max(1, min_steps))
    max_nb = min(max_nb_budget, max_nb_steps)
    best = 1
    for d in range(1, n + 1):
        if n % d == 0 and d <= max_nb:
            best = d
            if d * per_image_bytes >= _TARGET_BLOCK_BYTES:
                break
    return best


# --------------------------------------------------------------------------
# Single-pass kernel (whole image resident, nb images folded per grid step).
# --------------------------------------------------------------------------

def _se_single_pass_kernel(x_ref, wd_ref, bd_ref, wu_ref, bu_ref, o_ref,
                           *, inv_hw, nb):
    # x/o: (nb, C, HW); wd: (Cmid, C); bd: (Cmid, 1); wu: (C, Cmid); bu: (C, 1)
    wd = wd_ref[...]
    bd = bd_ref[...]
    wu = wu_ref[...]
    bu = bu_ref[...]
    for i in range(nb):  # static unroll over the folded batch
        # Global average pool: lane reduce with f32 accumulation.
        pooled = jnp.sum(x_ref[i], axis=-1, keepdims=True,
                         dtype=jnp.float32) * inv_hw                       # (C, 1)
        # 1x1 convs on the MXU (tiny column matmuls, no big intermediates).
        h = jnp.maximum(
            jnp.dot(wd, pooled, preferred_element_type=jnp.float32) + bd,
            0.0)                                                           # (Cmid, 1)
        s = jax.nn.sigmoid(
            jnp.dot(wu, h, preferred_element_type=jnp.float32) + bu)       # (C, 1)
        # Re-read x_ref for the rescale: the big block is not kept live across
        # the gate computation; multiply in the input dtype.
        o_ref[i] = x_ref[i] * s.astype(o_ref.dtype)


# --------------------------------------------------------------------------
# Two-pass kernels (large feature maps: tile HW; 1.5x traffic, small VMEM).
# --------------------------------------------------------------------------

def _se_pool_gate_kernel(x_ref, wd_ref, bd_ref, wu_ref, bu_ref, g_ref,
                         *, hw_total, hw_tile, inv_hw, need_mask):
    # grid = (N, n_hw); x: (1, C, hw_tile); g: (1, C, 1) resident across hw axis.
    hw_idx = pl.program_id(1)

    @pl.when(hw_idx == 0)
    def _init():
        g_ref[...] = jnp.zeros_like(g_ref)

    x = x_ref[0]                                                           # (C, hw_tile)
    if need_mask:  # zero out-of-bounds lanes of the (padded) last tile
        lane = jax.lax.broadcasted_iota(jnp.int32, x.shape, dimension=1)
        x = jnp.where(hw_idx * hw_tile + lane < hw_total, x, jnp.zeros_like(x))
    g_ref[0] += jnp.sum(x, axis=-1, keepdims=True, dtype=jnp.float32)

    @pl.when(hw_idx == pl.num_programs(1) - 1)
    def _finalize():
        pooled = g_ref[0] * inv_hw                                         # (C, 1)
        h = jnp.maximum(
            jnp.dot(wd_ref[...], pooled, preferred_element_type=jnp.float32)
            + bd_ref[...], 0.0)                                            # (Cmid, 1)
        g_ref[0] = jax.nn.sigmoid(
            jnp.dot(wu_ref[...], h, preferred_element_type=jnp.float32)
            + bu_ref[...])                                                 # (C, 1)


def _se_scale_kernel(x_ref, g_ref, o_ref):
    # x/o: (1, C, hw_tile); g: (1, C, 1) — pure streaming rescale.
    o_ref[...] = x_ref[...] * g_ref[...].astype(o_ref.dtype)


# --------------------------------------------------------------------------
# Wrapper
# --------------------------------------------------------------------------

def se_block(x, w_down, b_down, w_up, b_up, *, hw_tile=None, force_two_pass=False):
    """x: (N, C, H, W) -> (N, C, H, W). Same semantics as SEBlock.forward."""
    N, C, H, W = x.shape
    assert H == W, "SEBlock forward assumes square spatial dims (H == W)"
    Cmid = w_down.shape[0]
    HW = H * W
    itemsize = jnp.dtype(x.dtype).itemsize
    inv_hw = 1.0 / float(HW)

    # Weights as (Cmid, C)/(C, Cmid) f32 matrices; biases as f32 columns.
    wd = w_down.reshape(Cmid, C).astype(jnp.float32)
    wu = w_up.reshape(C, Cmid).astype(jnp.float32)
    bd = b_down.astype(jnp.float32).reshape(Cmid, 1)
    bu = b_up.astype(jnp.float32).reshape(C, 1)

    w_bytes = 4 * (2 * C * Cmid + C + Cmid)
    img_bytes = C * HW * itemsize
    limit_cap = _vmem_limit_cap()
    usable = max(8 << 20, limit_cap - 2 * w_bytes - (2 << 20))

    flops = 2 * N * C * HW + 4 * N * C * Cmid
    transcendentals = N * C

    x_flat = x.reshape(N, C, HW)   # free, contiguous; no HBM transpose anywhere

    single_pass = (not force_two_pass) and (4 * img_bytes <= usable)

    if single_pass:
        nb = _pick_batch_fold(N, img_bytes, usable, min(_MIN_GRID_STEPS, N))
        grid = (N // nb,)
        vmem_needed = 4 * nb * img_bytes + 2 * w_bytes + (1 << 20)
        cost = pl.CostEstimate(
            flops=flops, transcendentals=transcendentals,
            bytes_accessed=2 * N * C * HW * itemsize + w_bytes)

        out_flat = pl.pallas_call(
            partial(_se_single_pass_kernel, inv_hw=inv_hw, nb=nb),
            out_shape=jax.ShapeDtypeStruct((N, C, HW), x.dtype),
            grid_spec=pltpu.PrefetchScalarGridSpec(
                num_scalar_prefetch=0,
                grid=grid,
                in_specs=[
                    pl.BlockSpec((nb, C, HW), lambda n: (n, 0, 0)),
                    pl.BlockSpec((Cmid, C), lambda n: (0, 0)),
                    pl.BlockSpec((Cmid, 1), lambda n: (0, 0)),
                    pl.BlockSpec((C, Cmid), lambda n: (0, 0)),
                    pl.BlockSpec((C, 1), lambda n: (0, 0)),
                ],
                out_specs=pl.BlockSpec((nb, C, HW), lambda n: (n, 0, 0)),
            ),
            compiler_params=_compiler_params(("parallel",), vmem_needed, limit_cap),
            input_output_aliases={0: 0},
            cost_estimate=cost,
        )(x_flat, wd, bd, wu, bu)
        return out_flat.reshape(N, C, H, W)

    # ------------- two-pass path: whole image does not fit in VMEM -------------
    if hw_tile is None:
        target_tile_bytes = 4 << 20      # ~4 MiB tiles: near HBM roofline
        hw_tile = max(128, (target_tile_bytes // max(1, C * itemsize)) // 128 * 128)
    hw_tile = max(128, min(hw_tile, ((HW + 127) // 128) * 128))
    n_hw = pl.cdiv(HW, hw_tile)
    need_mask = (HW % hw_tile) != 0
    tile_bytes = C * hw_tile * itemsize

    # Pass 1: per-channel sums + gate (HW axis is a reduction -> "arbitrary").
    # TODO(synk): at N == 1 the HW reduction could be split across a leading
    # parallel axis of size 2 so both v7x TensorCores stay busy during pooling.
    gates = pl.pallas_call(
        partial(_se_pool_gate_kernel, hw_total=HW, hw_tile=hw_tile,
                inv_hw=inv_hw, need_mask=need_mask),
        out_shape=jax.ShapeDtypeStruct((N, C, 1), jnp.float32),
        grid_spec=pltpu.PrefetchScalarGridSpec(
            num_scalar_prefetch=0,
            grid=(N, n_hw),
            in_specs=[
                pl.BlockSpec((1, C, hw_tile), lambda n, h: (n, 0, h)),
                pl.BlockSpec((Cmid, C), lambda n, h: (0, 0)),
                pl.BlockSpec((Cmid, 1), lambda n, h: (0, 0)),
                pl.BlockSpec((C, Cmid), lambda n, h: (0, 0)),
                pl.BlockSpec((C, 1), lambda n, h: (0, 0)),
            ],
            out_specs=pl.BlockSpec((1, C, 1), lambda n, h: (n, 0, 0)),
        ),
        compiler_params=_compiler_params(
            ("parallel", "arbitrary"),
            2 * tile_bytes + 2 * w_bytes + (1 << 20), limit_cap),
        cost_estimate=pl.CostEstimate(
            flops=N * C * HW + 4 * N * C * Cmid,
            transcendentals=transcendentals,
            bytes_accessed=N * C * HW * itemsize + w_bytes),
    )(x_flat, wd, bd, wu, bu)

    # Pass 2: streaming rescale; both axes "parallel" (no alias: x is also read
    # by pass 1, and a defensive copy would cost a full extra HBM pass).
    out_flat = pl.pallas_call(
        _se_scale_kernel,
        out_shape=jax.ShapeDtypeStruct((N, C, HW), x.dtype),
        grid_spec=pltpu.PrefetchScalarGridSpec(
            num_scalar_prefetch=0,
            grid=(N, n_hw),
            in_specs=[
                pl.BlockSpec((1, C, hw_tile), lambda n, h: (n, 0, h)),
                pl.BlockSpec((1, C, 1), lambda n, h: (n, 0, 0)),
            ],
            out_specs=pl.BlockSpec((1, C, hw_tile), lambda n, h: (n, 0, h)),
        ),
        compiler_params=_compiler_params(("parallel", "parallel"),
                                         4 * tile_bytes + (1 << 20), limit_cap),
        cost_estimate=pl.CostEstimate(
            flops=N * C * HW, transcendentals=0,
            bytes_accessed=2 * N * C * HW * itemsize),
    )(x_flat, gates)
    return out_flat.reshape(N, C, H, W)


# --------------------------------------------------------------------------
# Pure-JAX reference of the PyTorch forward
# --------------------------------------------------------------------------

def se_block_reference(x, w_down, b_down, w_up, b_up):
    Cmid = w_down.shape[0]
    C = x.shape[1]
    pooled = jnp.mean(x, axis=(2, 3))                               # (N, C)
    h = jnp.maximum(pooled @ w_down.reshape(Cmid, C).T + b_down, 0.0)
    s = jax.nn.sigmoid(h @ w_up.reshape(C, Cmid).T + b_up)
    return x * s[:, :, None, None]


if __name__ == "__main__":
    def make_params(key, N, C, H, W):
        Cmid = max(1, C // 8)
        kx, kwd, kbd, kwu, kbu = jax.random.split(key, 5)
        x = jax.random.normal(kx, (N, C, H, W), dtype=jnp.float32)
        w_down = jax.random.normal(kwd, (Cmid, C), dtype=jnp.float32) * 0.1
        b_down = jax.random.normal(kbd, (Cmid,), dtype=jnp.float32) * 0.1
        w_up = jax.random.normal(kwu, (C, Cmid), dtype=jnp.float32) * 0.1
        b_up = jax.random.normal(kbu, (C,), dtype=jnp.float32) * 0.1
        return x, w_down, b_down, w_up, b_up

    key = jax.random.PRNGKey(0)
    k1, k2, k3 = jax.random.split(key, 3)

    # 1) module-default-ish shape: single pass, grid over the batch
    args = make_params(k1, 2, 16, 16, 16)
    out = jax.block_until_ready(se_block(*args))
    ref = se_block_reference(*args)
    assert out.shape == args[0].shape
    assert jnp.allclose(out, ref, atol=1e-5, rtol=1e-5), "single-pass mismatch"

    # 2) 7x7 feature map, wide channels (HW < 128): single pass, (N, C, HW) layout
    args = make_params(k2, 2, 128, 7, 7)
    out = jax.block_until_ready(se_block(*args))
    ref = se_block_reference(*args)
    assert jnp.allclose(out, ref, atol=1e-5, rtol=1e-5), "small-HW mismatch"

    # 3) force the two-pass path with a ragged last HW tile (HW=576, tile=256)
    args = make_params(k3, 2, 32, 24, 24)
    out = jax.block_until_ready(se_block(*args, hw_tile=256, force_two_pass=True))
    ref = se_block_reference(*args)
    assert jnp.allclose(out, ref, atol=1e-5, rtol=1e-5), "two-pass mismatch"

    print("KERNEL_OK")
</pallas_src>

<mosaic_0001>
module attributes {stable_mosaic.version = 11 : i64} {
  func.func @_se_single_pass_kernel(%arg0: i32, %arg1: memref<1x16x256xf32, #tpu.memory_space<vmem>>, %arg2: memref<2x16xf32, #tpu.memory_space<vmem>>, %arg3: memref<2x1xf32, #tpu.memory_space<vmem>>, %arg4: memref<16x2xf32, #tpu.memory_space<vmem>>, %arg5: memref<16x1xf32, #tpu.memory_space<vmem>>, %arg6: memref<1x16x256xf32, #tpu.memory_space<vmem>>) attributes {dimension_semantics = [#tpu.dimension_semantics<parallel>], iteration_bounds = array<i64: 2>, scalar_prefetch = 0 : i64, scratch_operands = 0 : i64, tpu.core_type = #tpu.core_type<tc>, window_params = [{transform_indices = @transform_0, window_bounds = array<i64: 1, 16, 256>}, {pipeline_mode = #tpu.pipeline_mode<synchronous>, transform_indices = @transform_1, window_bounds = array<i64: 2, 16>}, {pipeline_mode = #tpu.pipeline_mode<synchronous>, transform_indices = @transform_2, window_bounds = array<i64: 2, 1>}, {pipeline_mode = #tpu.pipeline_mode<synchronous>, transform_indices = @transform_3, window_bounds = array<i64: 16, 2>}, {pipeline_mode = #tpu.pipeline_mode<synchronous>, transform_indices = @transform_4, window_bounds = array<i64: 16, 1>}, {transform_indices = @transform_5, window_bounds = array<i64: 1, 16, 256>}]} {
    %c0 = arith.constant 0 : index
    %c0_0 = arith.constant 0 : index
    %0 = vector.load %arg2[%c0, %c0_0] : memref<2x16xf32, #tpu.memory_space<vmem>>, vector<2x16xf32>
    %c0_1 = arith.constant 0 : index
    %c0_2 = arith.constant 0 : index
    %1 = vector.load %arg3[%c0_1, %c0_2] : memref<2x1xf32, #tpu.memory_space<vmem>>, vector<2x1xf32>
    %c0_3 = arith.constant 0 : index
    %c0_4 = arith.constant 0 : index
    %2 = vector.load %arg4[%c0_3, %c0_4] : memref<16x2xf32, #tpu.memory_space<vmem>>, vector<16x2xf32>
    %c0_5 = arith.constant 0 : index
    %c0_6 = arith.constant 0 : index
    %3 = vector.load %arg5[%c0_5, %c0_6] : memref<16x1xf32, #tpu.memory_space<vmem>>, vector<16x1xf32>
    %c0_7 = arith.constant 0 : index
    %c0_8 = arith.constant 0 : index
    %c0_9 = arith.constant 0 : index
    %4 = vector.load %arg1[%c0_7, %c0_8, %c0_9] : memref<1x16x256xf32, #tpu.memory_space<vmem>>, vector<1x16x256xf32>
    %5 = vector.shape_cast %4 : vector<1x16x256xf32> to vector<16x256xf32>
    %cst = arith.constant dense<0.000000e+00> : vector<16xf32>
    %6 = vector.multi_reduction <add>, %5, %cst [1] : vector<16x256xf32> to vector<16xf32>
    %7 = vector.shape_cast %6 : vector<16xf32> to vector<16x1xf32>
    %cst_10 = arith.constant 3.906250e-03 : f32
    %8 = vector.broadcast %cst_10 : f32 to vector<16x1xf32>
    %9 = arith.mulf %7, %8 : vector<16x1xf32>
    %cst_11 = arith.constant dense<0.000000e+00> : vector<2x1xf32>
    %10 = tpu.matmul %0, %9, %cst_11 {dimension_numbers = #tpu.dot_dimension_numbers<[1], [0], [0], [1], [0, 0, 1, 1], [], []>} : vector<2x16xf32>, vector<16x1xf32>, vector<2x1xf32> -> vector<2x1xf32>
    %11 = arith.addf %10, %1 : vector<2x1xf32>
    %cst_12 = arith.constant 0.000000e+00 : f32
    %12 = vector.broadcast %cst_12 : f32 to vector<2x1xf32>
    %13 = arith.maximumf %11, %12 : vector<2x1xf32>
    %cst_13 = arith.constant dense<0.000000e+00> : vector<16x1xf32>
    %14 = tpu.matmul %2, %13, %cst_13 {dimension_numbers = #tpu.dot_dimension_numbers<[1], [0], [0], [1], [0, 0, 1, 1], [], []>} : vector<16x2xf32>, vector<2x1xf32>, vector<16x1xf32> -> vector<16x1xf32>
    %15 = arith.addf %14, %3 : vector<16x1xf32>
    %16 = arith.negf %15 : vector<16x1xf32>
    %17 = math.exp %16 : vector<16x1xf32>
    %cst_14 = arith.constant 1.000000e+00 : f32
    %18 = vector.broadcast %cst_14 : f32 to vector<16x1xf32>
    %19 = arith.addf %18, %17 : vector<16x1xf32>
    %20 = arith.divf %18, %19 : vector<16x1xf32>
    %c0_15 = arith.constant 0 : index
    %c0_16 = arith.constant 0 : index
    %c0_17 = arith.constant 0 : index
    %21 = vector.load %arg1[%c0_15, %c0_16, %c0_17] : memref<1x16x256xf32, #tpu.memory_space<vmem>>, vector<1x16x256xf32>
    %22 = vector.shape_cast %21 : vector<1x16x256xf32> to vector<16x256xf32>
    %23 = vector.broadcast %20 : vector<16x1xf32> to vector<16x256xf32>
    %24 = arith.mulf %22, %23 : vector<16x256xf32>
    %c0_18 = arith.constant 0 : index
    %c0_19 = arith.constant 0 : index
    %c0_20 = arith.constant 0 : index
    %25 = vector.load %arg6[%c0_18, %c0_19, %c0_20] : memref<1x16x256xf32, #tpu.memory_space<vmem>>, vector<1x16x256xf32>
    %26 = vector.shape_cast %25 : vector<1x16x256xf32> to vector<16x256xf32>
    %27 = vector.shape_cast %24 : vector<16x256xf32> to vector<1x16x256xf32>
    tpu.vector_store %arg6[%c0_18, %c0_19, %c0_20], %27 {strides = array<i32>} : memref<1x16x256xf32, #tpu.memory_space<vmem>>, vector<1x16x256xf32>,
    return
  }
  func.func @transform_0(%arg0: i32) -> (i32, i32, i32) {
    %c0_i32 = arith.constant 0 : i32
    %c0_i32_0 = arith.constant 0 : i32
    %c0_i32_1 = arith.constant 0 : i32
    return %arg0, %c0_i32, %c0_i32_0 : i32, i32, i32
  }
  func.func @transform_1(%arg0: i32) -> (i32, i32) {
    %c0_i32 = arith.constant 0 : i32
    %c0_i32_0 = arith.constant 0 : i32
    %c0_i32_1 = arith.constant 0 : i32
    return %c0_i32, %c0_i32_0 : i32, i32
  }
  func.func @transform_2(%arg0: i32) -> (i32, i32) {
    %c0_i32 = arith.constant 0 : i32
    %c0_i32_0 = arith.constant 0 : i32
    %c0_i32_1 = arith.constant 0 : i32
    return %c0_i32, %c0_i32_0 : i32, i32
  }
  func.func @transform_3(%arg0: i32) -> (i32, i32) {
    %c0_i32 = arith.constant 0 : i32
    %c0_i32_0 = arith.constant 0 : i32
    %c0_i32_1 = arith.constant 0 : i32
    return %c0_i32, %c0_i32_0 : i32, i32
  }
  func.func @transform_4(%arg0: i32) -> (i32, i32) {
    %c0_i32 = arith.constant 0 : i32
    %c0_i32_0 = arith.constant 0 : i32
    %c0_i32_1 = arith.constant 0 : i32
    return %c0_i32, %c0_i32_0 : i32, i32
  }
  func.func @transform_5(%arg0: i32) -> (i32, i32, i32) {
    %c0_i32 = arith.constant 0 : i32
    %c0_i32_0 = arith.constant 0 : i32
    %c0_i32_1 = arith.constant 0 : i32
    return %arg0, %c0_i32, %c0_i32_0 : i32, i32, i32
  }
}

</mosaic_0001>

<llo_original>
// kernel: tpu_custom_call.1
$region0: #{tpu_custom_call.1}
  #allocation0 [shape = 'u32[]', space=smem, size = 0x4, offset = 0x4, fixed_abs, tag = 'smem constant byte address 0x4 - core index']
  #allocation1 [shape = 'u32[144,128]{1,0:T(1,128)}', space=vmem, size = 0x12000, scoped, tag = 'internal scratch']
  %s0 = inlined_call_operand.hbm [shape: f32[2,16,256], index: 0, kind: input, shape index: {}, may-alias: {0,5}]
  %s1 = inlined_call_operand.vmem [shape: f32[2,16], index: 1, kind: input, shape index: {}]
  %s2 = inlined_call_operand.vmem [shape: f32[2,1], index: 2, kind: input, shape index: {}]
  %s3 = inlined_call_operand.vmem [shape: f32[16,2], index: 3, kind: input, shape index: {}]
  %s4 = inlined_call_operand.vmem [shape: f32[16,1], index: 4, kind: input, shape index: {}]
  %s5 = inlined_call_operand.hbm [shape: f32[2,16,256], index: 5, kind: output, shape index: {}, may-alias: {0,5}]
  %s6 = sld [smem:[#allocation0]]
  $region57: #{tpu_custom_call.1} parent=0
    _
  %s8 = ssub.s32 1, %s6
  %s9 = scalar_select 0, %s8, %s6
  $region1: #{tpu_custom_call.1} parent=0
    #allocation2 [shape = 'u8[32768]{0}', space=vmem, size = 0x8000, scoped, tag = 'input window, operand 0']
    #allocation3 [shape = 's32[2]{0}', space=sflag, size = 0x8, scoped, tag = 'scoped memory for tpu_custom_call.1']
    #allocation4 [shape = 's32[2]{0}', space=sflag, size = 0x8, scoped, tag = 'scoped memory for tpu_custom_call.1']
    #allocation5 [shape = 'u8[32768]{0}', space=vmem, size = 0x8000, scoped, tag = 'output window, operand 0']
    %10 = vsyncpa [#allocation3], 0
    %s11 = scalar_lea.sflag [#allocation3], 1
    %12 = vsyncpa %s11, 0
    %13 = vsyncpa [#allocation4], 0
    %s14 = scalar_lea.sflag [#allocation4], 1
    %15 = vsyncpa %s14, 0
    loop: start=0, step=1, limit=4
    $region2: #{tpu_custom_call.1} parent=1 // loop_pre_header
      _
    $region3: #{tpu_custom_call.1} parent=1 // loop_header
      %s17 = sphi 0, %s21
      %p18 = scmp.ge.s32.totalorder %s17, 4
      %s27 = sphi 0, %s29
      %s30 = sphi 0, %s27
      %s31 = sphi 0, %s30
      %s47 = sphi 0, %s31
      %s51 = sphi 0, %s51
      %s53 = sphi 0, %s51
      %s54 = sphi 0, %s53
      %s68 = sphi 0, %s54
      %s72 = sphi 0, %s72
      %s74 = sphi 0, %s72
      %s75 = sphi 0, %s74
      %s89 = sphi 0, %s75
      %s93 = sphi 0, %s93
      %s95 = sphi 0, %s93
      %s96 = sphi 0, %s95
      %s110 = sphi 0, %s96
      %s114 = sphi 0, %s114
      %s116 = sphi 0, %s114
      %s117 = sphi 0, %s116
      %s131 = sphi 0, %s117
      %s137 = sphi 0, %s139
      %s140 = sphi 0, %s137
      %s141 = sphi 0, %s140
      %s157 = sphi 0, %s141
    $region4: #{tpu_custom_call.1} parent=1 // loop_header_branch
      %20 = sbr.rel (%p18) target = $region8
    $region5: #{tpu_custom_call.1} parent=1 // loop_body
      %s22 = ssub.s32 %s17, 1
      %s23 = ssub.s32 %s17, 2
      %s24 = sadd.s32 %s17, 1
      %s25 = ssub.s32 %s17, %s24
      %p26 = scmp.eq.s32.totalorder %s25, 0
      %s28 = sadd.s32 %s27, 1
      %s29 = scalar_select %p26, %s27, %s28
      %p32 = pneg %p26
      %p33 = scmp.eq.s32.totalorder %s17, 1
      %p34 = por %p32, %p33
      %p35 = scmp.ne.s32.totalorder %s27, %s30
      %p36 = scmp.eq.s32.totalorder %s17, 0
      %p37 = por %p35, %p36
      %p38 = scmp.ne.s32.totalorder %s27, %s30
      %p39 = scmp.eq.s32.totalorder %s22, 1
      %p40 = por %p38, %p39
      %p41 = scmp.ne.s32.totalorder %s30, %s31
      %p42 = scmp.eq.s32.totalorder %s22, 0
      %p43 = por %p41, %p42
      %p44 = scmp.ne.s32.totalorder %s30, %s31
      %p45 = scmp.eq.s32.totalorder %s23, 1
      %p46 = por %p44, %p45
      %p48 = scmp.ne.s32.totalorder %s31, %s47
      %p49 = scmp.eq.s32.totalorder %s23, 0
      %p50 = por %p48, %p49
      %s52 = sadd.s32 %s51, 1
      %p55 = scmp.eq.s32.totalorder %s17, 1
      %p56 = scmp.ne.s32.totalorder %s51, %s53
      %p57 = scmp.eq.s32.totalorder %s17, 0
      %p58 = por %p56, %p57
      %p59 = scmp.ne.s32.totalorder %s51, %s53
      %p60 = scmp.eq.s32.totalorder %s22, 1
      %p61 = por %p59, %p60
      %p62 = scmp.ne.s32.totalorder %s53, %s54
      %p63 = scmp.eq.s32.totalorder %s22, 0
      %p64 = por %p62, %p63
      %p65 = scmp.ne.s32.totalorder %s53, %s54
      %p66 = scmp.eq.s32.totalorder %s23, 1
      %p67 = por %p65, %p66
      %p69 = scmp.ne.s32.totalorder %s54, %s68
      %p70 = scmp.eq.s32.totalorder %s23, 0
      %p71 = por %p69, %p70
      %s73 = sadd.s32 %s72, 1
      %p76 = scmp.eq.s32.totalorder %s17, 1
      %p77 = scmp.ne.s32.totalorder %s72, %s74
      %p78 = scmp.eq.s32.totalorder %s17, 0
      %p79 = por %p77, %p78
      %p80 = scmp.ne.s32.totalorder %s72, %s74
      %p81 = scmp.eq.s32.totalorder %s22, 1
      %p82 = por %p80, %p81
      %p83 = scmp.ne.s32.totalorder %s74, %s75
      %p84 = scmp.eq.s32.totalorder %s22, 0
      %p85 = por %p83, %p84
      %p86 = scmp.ne.s32.totalorder %s74, %s75
      %p87 = scmp.eq.s32.totalorder %s23, 1
      %p88 = por %p86, %p87
      %p90 = scmp.ne.s32.totalorder %s75, %s89
      %p91 = scmp.eq.s32.totalorder %s23, 0
      %p92 = por %p90, %p91
      %s94 = sadd.s32 %s93, 1
      %p97 = scmp.eq.s32.totalorder %s17, 1
      %p98 = scmp.ne.s32.totalorder %s93, %s95
      %p99 = scmp.eq.s32.totalorder %s17, 0
      %p100 = por %p98, %p99
      %p101 = scmp.ne.s32.totalorder %s93, %s95
      %p102 = scmp.eq.s32.totalorder %s22, 1
      %p103 = por %p101, %p102
      %p104 = scmp.ne.s32.totalorder %s95, %s96
      %p105 = scmp.eq.s32.totalorder %s22, 0
      %p106 = por %p104, %p105
      %p107 = scmp.ne.s32.totalorder %s95, %s96
      %p108 = scmp.eq.s32.totalorder %s23, 1
      %p109 = por %p107, %p108
      %p111 = scmp.ne.s32.totalorder %s96, %s110
      %p112 = scmp.eq.s32.totalorder %s23, 0
      %p113 = por %p111, %p112
      %s115 = sadd.s32 %s114, 1
      %p118 = scmp.eq.s32.totalorder %s17, 1
      %p119 = scmp.ne.s32.totalorder %s114, %s116
      %p120 = scmp.eq.s32.totalorder %s17, 0
      %p121 = por %p119, %p120
      %p122 = scmp.ne.s32.totalorder %s114, %s116
      %p123 = scmp.eq.s32.totalorder %s22, 1
      %p124 = por %p122, %p123
      %p125 = scmp.ne.s32.totalorder %s116, %s117
      %p126 = scmp.eq.s32.totalorder %s22, 0
      %p127 = por %p125, %p126
      %p128 = scmp.ne.s32.totalorder %s116, %s117
      %p129 = scmp.eq.s32.totalorder %s23, 1
      %p130 = por %p128, %p129
      %p132 = scmp.ne.s32.totalorder %s117, %s131
      %p133 = scmp.eq.s32.totalorder %s23, 0
      %p134 = por %p132, %p133
      %s135 = ssub.s32 %s17, %s24
      %p136 = scmp.eq.s32.totalorder %s135, 0
      %s138 = sadd.s32 %s137, 1
      %s139 = scalar_select %p136, %s137, %s138
      %p142 = pneg %p136
      %p143 = scmp.eq.s32.totalorder %s17, 1
      %p144 = por %p142, %p143
      %p145 = scmp.ne.s32.totalorder %s137, %s140
      %p146 = scmp.eq.s32.totalorder %s17, 0
      %p147 = por %p145, %p146
      %p148 = scmp.ne.s32.totalorder %s137, %s140
      %p149 = scmp.eq.s32.totalorder %s22, 1
      %p150 = por %p148, %p149
      %p151 = scmp.ne.s32.totalorder %s140, %s141
      %p152 = scmp.eq.s32.totalorder %s22, 0
      %p153 = por %p151, %p152
      %p154 = scmp.ne.s32.totalorder %s140, %s141
      %p155 = scmp.eq.s32.totalorder %s23, 1
      %p156 = por %p154, %p155
      %p158 = scmp.ne.s32.totalorder %s141, %s157
      %p159 = scmp.eq.s32.totalorder %s23, 0
      %p160 = por %p158, %p159
      %p161 = scmp.le.s32.totalorder 1, %s17
      %p162 = scmp.lt.s32.totalorder %s17, 3
      %p163 = pnand %p161, %p162
      %p164 = pneg %p163
      // Predicated region
      $region9: #{tpu_custom_call.1} parent=5 // pred_check
        _
      $region10: #{tpu_custom_call.1} parent=5 // pred_check_branch
        %166 = sbr.rel (%p163) target = $region12
      $region11: #{tpu_custom_call.1} parent=5 // pred_region
        %s167 = ssub.s32 %s17, 1
        // Predicated region
        $region13: #{tpu_custom_call.1} parent=11 // pred_check
          %p168 = pneg %p64
        $region14: #{tpu_custom_call.1} parent=11 // pred_check_branch
          %170 = sbr.rel (%p168) target = $region16
        $region15: #{tpu_custom_call.1} parent=11 // pred_region
          _
        $region16: #{tpu_custom_call.1} parent=11 // pred_fallthru
          _
        // Predicated region
        $region17: #{tpu_custom_call.1} parent=11 // pred_check
          %p171 = pneg %p85
        $region18: #{tpu_custom_call.1} parent=11 // pred_check_branch
          %173 = sbr.rel (%p171) target = $region20
        $region19: #{tpu_custom_call.1} parent=11 // pred_region
          _
        $region20: #{tpu_custom_call.1} parent=11 // pred_fallthru
          _
        // Predicated region
        $region21: #{tpu_custom_call.1} parent=11 // pred_check
          %p174 = pneg %p106
        $region22: #{tpu_custom_call.1} parent=11 // pred_check_branch
          %176 = sbr.rel (%p174) target = $region24
        $region23: #{tpu_custom_call.1} parent=11 // pred_region
          _
        $region24: #{tpu_custom_call.1} parent=11 // pred_fallthru
          _
        // Predicated region
        $region25: #{tpu_custom_call.1} parent=11 // pred_check
          %p177 = pneg %p127
        $region26: #{tpu_custom_call.1} parent=11 // pred_check_branch
          %179 = sbr.rel (%p177) target = $region28
        $region27: #{tpu_custom_call.1} parent=11 // pred_region
          _
        $region28: #{tpu_custom_call.1} parent=11 // pred_fallthru
          _
      $region12: #{tpu_custom_call.1} parent=5 // pred_fallthru
        _
      %p180 = scmp.lt.s32.totalorder %s17, 2
      // Predicated region
      $region29: #{tpu_custom_call.1} parent=5 // pred_check
        %p181 = pneg %p180
      $region30: #{tpu_custom_call.1} parent=5 // pred_check_branch
        %183 = sbr.rel (%p181) target = $region32
      $region31: #{tpu_custom_call.1} parent=5 // pred_region
        // Predicated region
        $region33: #{tpu_custom_call.1} parent=31 // pred_check
          %p184 = pneg %p37
        $region34: #{tpu_custom_call.1} parent=31 // pred_check_branch
          %186 = sbr.rel (%p184) target = $region36
        $region35: #{tpu_custom_call.1} parent=31 // pred_region
          %s187 = sand.u32 %s27, 1
          %s188 = scalar_lea.sflag [#allocation3], %s187
          %s189 = sand.u32 %s27, 1
          %s190 = smul.addr %s189, 32
          %s191 = scalar_lea.vmem [#allocation2], %s190
          %s193 = ssub.s32 512, 512
          %194 = vsyncadd %s188, %s193
          %s195 = smul.addr %s17, 4
          %s196 = smul.addr %s195, 128
          %s197 = scalar_lea.hbm %s0, %s196
          %s198 = sshll.u32 %s191, 4
          %s199 = int_to_ptr.vmem [resolvable:$true] %s198
          %204 = dma.hbm_to_vmem [thread:$0]  %s197, 512, %s199, %s188, 256, 256, 16
        $region36: #{tpu_custom_call.1} parent=31 // pred_fallthru
          _
      $region32: #{tpu_custom_call.1} parent=5 // pred_fallthru
        _
      %p205 = scmp.le.s32.totalorder 1, %s17
      %p206 = scmp.lt.s32.totalorder %s17, 3
      %p207 = pnand %p205, %p206
      %p208 = pneg %p207
      // Predicated region
      $region37: #{tpu_custom_call.1} parent=5 // pred_check
        _
      $region38: #{tpu_custom_call.1} parent=5 // pred_check_branch
        %210 = sbr.rel (%p207) target = $region40
      $region39: #{tpu_custom_call.1} parent=5 // pred_region
        %s211 = ssub.s32 %s17, 1
        %s212 = sand.u32 %s30, 1
        %s213 = scalar_lea.sflag [#allocation3], %s212
        %s214 = sand.u32 %s30, 1
        %s215 = smul.addr %s214, 32
        %s216 = scalar_lea.vmem [#allocation2], %s215
        // Predicated region
        $region41: #{tpu_custom_call.1} parent=39 // pred_check
          %p217 = pneg %p43
        $region42: #{tpu_custom_call.1} parent=39 // pred_check_branch
          %219 = sbr.rel (%p217) target = $region44
        $region43: #{tpu_custom_call.1} parent=39 // pred_region
          %220 = dma.done %s213, 512
        $region44: #{tpu_custom_call.1} parent=39 // pred_fallthru
          _
        %s221 = sand.u32 %s30, 1
        %s222 = scalar_lea.sflag [#allocation3], %s221
        %s223 = sand.u32 %s30, 1
        %s224 = smul.addr %s223, 32
        %s225 = scalar_lea.vmem [#allocation2], %s224
        %p226 = pneg %p43
        %p227 = pneg %p40
        %p228 = pneg %p64
        %p229 = pneg %p61
        %p230 = pneg %p85
        %p231 = pneg %p82
        %p232 = pneg %p106
        %p233 = pneg %p103
        %p234 = pneg %p127
        %p235 = pneg %p124
        %p236 = pneg %p153
        %p237 = pneg %p150
        %s238 = sand.u32 %s140, 1
        %s239 = scalar_lea.sflag [#allocation4], %s238
        %s240 = sand.u32 %s140, 1
        %s241 = smul.addr %s240, 32
        %s242 = scalar_lea.vmem [#allocation5], %s241
        %v243 = vld [vmem:[%s1] sm:$0x3]
        %v244 = vld [vmem:[%s2] sm:$0x3]
        %v245 = vld [vmem:[%s3] sm:$0xff]
        %v246 = vld [vmem:[%s3 + $0x8] sm:$0xff]
        %v247 = vld [vmem:[%s4] sm:$0xff]
        %v248 = vld [vmem:[%s4 + $0x8] sm:$0xff]
        %v249 = vld [vmem:[%s216] sm:$0xff]
        %v250 = vld [vmem:[%s216 + $0x8] sm:$0xff]
        %v251 = vld [vmem:[%s216 + $0x10] sm:$0xff]
        %v252 = vld [vmem:[%s216 + $0x18] sm:$0xff]
        %v253 = vadd.f32 %v249, %v250
        %254 = vadd.xlane.f32.xlu0 %v253
        %v255 = vpop.xlane.xlu0 %254
        %v256 = vadd.f32 %v251, %v252
        %257 = vadd.xlane.f32.xlu0 %v256
        %v258 = vpop.xlane.xlu0 %257
        %v259 = vmul.f32 %v255, 0.00390625
        %v260 = vmul.f32 %v258, 0.00390625
        %vm261 = vcmask 130048
        %v263 = vsel %vm261, %v243, 0
        %265 = vmatprep.subr.mxu0 0.0
        %266 = vmatpush1.msra.mxu0 0.0
        %267 = vmatprep.subr.mxu0 0.0
        %268 = vmatpush1.msra.mxu0 0.0
        %269 = vmatprep.subr.mxu0 0.0
        %270 = vmatpush1.msra.mxu0 0.0
        %271 = vmatprep.subr.mxu0 0.0
        %272 = vmatpush1.msra.mxu0 0.0
        %273 = vmatprep.subr.mxu0 0.0
        %274 = vmatpush1.msra.mxu0 0.0
        %275 = vmatprep.subr.mxu0 0.0
        %276 = vmatpush1.msra.mxu0 0.0
        %277 = vmatprep.subr.mxu0 0.0
        %278 = vmatpush1.msra.mxu0 0.0
        %279 = vmatprep.subr.mxu0 0.0
        %280 = vmatpush1.msra.mxu0 0.0
        %281 = vmatprep.subr.mxu0 0.0
        %282 = vmatpush1.msra.mxu0 0.0
        %283 = vmatprep.subr.mxu0 0.0
        %284 = vmatpush1.msra.mxu0 0.0
        %285 = vmatprep.subr.mxu0 0.0
        %286 = vmatpush1.msra.mxu0 0.0
        %287 = vmatprep.subr.mxu0 0.0
        %288 = vmatpush1.msra.mxu0 0.0
        %289 = vmatprep.subr.mxu0 0.0
        %290 = vmatpush1.msra.mxu0 0.0
        %291 = vmatprep.subr.mxu0 0.0
        %292 = vmatpush1.msra.mxu0 0.0
        %293 = vmatprep.subr.mxu0 0.0
        %294 = vmatpush1.msra.mxu0 %v260
        %295 = vmatprep.subr.mxu0 0.0
        %296 = vmatpush1.msra.mxu0 %v259
        %297 = vmatprep.subr.mxu0 0.0
        %298 = vmatpush2.msra.mxu0 0.0
        %299 = vmatprep.subr.mxu0 0.0
        %300 = vmatpush2.msra.mxu0 0.0
        %301 = vmatprep.subr.mxu0 0.0
        %302 = vmatpush2.msra.mxu0 0.0
        %303 = vmatprep.subr.mxu0 0.0
        %304 = vmatpush2.msra.mxu0 0.0
        %305 = vmatprep.subr.mxu0 0.0
        %306 = vmatpush2.msra.mxu0 0.0
        %307 = vmatprep.subr.mxu0 0.0
        %308 = vmatpush2.msra.mxu0 0.0
        %309 = vmatprep.subr.mxu0 0.0
        %310 = vmatpush2.msra.mxu0 0.0
        %311 = vmatprep.subr.mxu0 0.0
        %312 = vmatpush2.msra.mxu0 0.0
        %313 = vmatprep.subr.mxu0 0.0
        %314 = vmatpush2.msra.mxu0 0.0
        %315 = vmatprep.subr.mxu0 0.0
        %316 = vmatpush2.msra.mxu0 0.0
        %317 = vmatprep.subr.mxu0 0.0
        %318 = vmatpush2.msra.mxu0 0.0
        %319 = vmatprep.subr.mxu0 0.0
        %320 = vmatpush2.msra.mxu0 0.0
        %321 = vmatprep.subr.mxu0 0.0
        %322 = vmatpush2.msra.mxu0 0.0
        %323 = vmatprep.subr.mxu0 0.0
        %324 = vmatpush2.msra.mxu0 0.0
        %325 = vmatprep.subr.mxu0 0.0
        %326 = vmatpush2.msra.mxu0 0.0
        %327 = vmatprep.subr.mxu0 0.0
        %328 = vmatpush2.msra.mxu0 0.0
        %329 = vmatprep.mubr.f32.mxu0 0.0
        %330 = vmatmul.mubr.f32.gmra.mxu0 %v263
        %v331 = vpop.f32.mrf.mxu0
        %v332 = vadd.f32 %v244, %v331
        %v333 = vpop.f32.mrf.mxu0
        %334 = vdwg.mxu0
        %v335 = vmax.f32 %v332, 0.0
        %vm336 = vcmask 15360
        %v338 = vsel %vm336, %v245, 0
        %v341 = vsel %vm336, %v246, 0
        %vm343 = vcmask 1041408
        %v345 = vsel %vm343, %v335, 0
        %347 = vmatprep.subr.mxu0 0.0
        %348 = vmatpush1.msra.mxu0 0.0
        %349 = vmatprep.subr.mxu0 0.0
        %350 = vmatpush1.msra.mxu0 0.0
        %351 = vmatprep.subr.mxu0 0.0
        %352 = vmatpush1.msra.mxu0 0.0
        %353 = vmatprep.subr.mxu0 0.0
        %354 = vmatpush1.msra.mxu0 0.0
        %355 = vmatprep.subr.mxu0 0.0
        %356 = vmatpush1.msra.mxu0 0.0
        %357 = vmatprep.subr.mxu0 0.0
        %358 = vmatpush1.msra.mxu0 0.0
        %359 = vmatprep.subr.mxu0 0.0
        %360 = vmatpush1.msra.mxu0 0.0
        %361 = vmatprep.subr.mxu0 0.0
        %362 = vmatpush1.msra.mxu0 0.0
        %363 = vmatprep.subr.mxu0 0.0
        %364 = vmatpush1.msra.mxu0 0.0
        %365 = vmatprep.subr.mxu0 0.0
        %366 = vmatpush1.msra.mxu0 0.0
        %367 = vmatprep.subr.mxu0 0.0
        %368 = vmatpush1.msra.mxu0 0.0
        %369 = vmatprep.subr.mxu0 0.0
        %370 = vmatpush1.msra.mxu0 0.0
        %371 = vmatprep.subr.mxu0 0.0
        %372 = vmatpush1.msra.mxu0 0.0
        %373 = vmatprep.subr.mxu0 0.0
        %374 = vmatpush1.msra.mxu0 0.0
        %375 = vmatprep.subr.mxu0 0.0
        %376 = vmatpush1.msra.mxu0 0.0
        %377 = vmatprep.subr.mxu0 0.0
        %378 = vmatpush1.msra.mxu0 %v345
        %379 = vmatprep.subr.mxu0 0.0
        %380 = vmatpush2.msra.mxu0 0.0
        %381 = vmatprep.subr.mxu0 0.0
        %382 = vmatpush2.msra.mxu0 0.0
        %383 = vmatprep.subr.mxu0 0.0
        %384 = vmatpush2.msra.mxu0 0.0
        %385 = vmatprep.subr.mxu0 0.0
        %386 = vmatpush2.msra.mxu0 0.0
        %387 = vmatprep.subr.mxu0 0.0
        %388 = vmatpush2.msra.mxu0 0.0
        %389 = vmatprep.subr.mxu0 0.0
        %390 = vmatpush2.msra.mxu0 0.0
        %391 = vmatprep.subr.mxu0 0.0
        %392 = vmatpush2.msra.mxu0 0.0
        %393 = vmatprep.subr.mxu0 0.0
        %394 = vmatpush2.msra.mxu0 0.0
        %395 = vmatprep.subr.mxu0 0.0
        %396 = vmatpush2.msra.mxu0 0.0
        %397 = vmatprep.subr.mxu0 0.0
        %398 = vmatpush2.msra.mxu0 0.0
        %399 = vmatprep.subr.mxu0 0.0
        %400 = vmatpush2.msra.mxu0 0.0
        %401 = vmatprep.subr.mxu0 0.0
        %402 = vmatpush2.msra.mxu0 0.0
        %403 = vmatprep.subr.mxu0 0.0
        %404 = vmatpush2.msra.mxu0 0.0
        %405 = vmatprep.subr.mxu0 0.0
        %406 = vmatpush2.msra.mxu0 0.0
        %407 = vmatprep.subr.mxu0 0.0
        %408 = vmatpush2.msra.mxu0 0.0
        %409 = vmatprep.subr.mxu0 0.0
        %410 = vmatpush2.msra.mxu0 0.0
        %411 = vmatprep.mubr.f32.mxu0 0.0
        %412 = vmatmul.mubr.f32.gmra.mxu0 %v338
        %v413 = vpop.f32.mrf.mxu0
        %v414 = vadd.f32 %v247, %v413
        %v415 = vpop.f32.mrf.mxu0
        %416 = vmatprep.mubr.f32.mxu0 0.0
        %417 = vmatmul.mubr.f32.gmra.mxu0 %v341
        %v418 = vpop.f32.mrf.mxu0
        %v419 = vadd.f32 %v248, %v418
        %v420 = vpop.f32.mrf.mxu0
        %421 = vdwg.mxu0
        %v422 = vxor.u32 %v414, 2147483648
        %v423 = vxor.u32 %v419, 2147483648
        %v424 = vmul.f32 %v422, 1.442695
        %v425 = vpow.pop %v424
        %v426 = vmul.f32 %v423, 1.442695
        %v427 = vpow.pop %v426
        %v428 = vadd.f32 %v425, 1.0
        %v429 = vadd.f32 %v427, 1.0
        %v430 = vrcp.pop %v428
        %v431 = vmul.f32 1.0, %v430
        %v432 = vrcp.pop %v429
        %v433 = vmul.f32 1.0, %v432
        %435 = vset.pattern.permute.xlu0 0
        %436 = vperm.xlu0 %435, %v431
        %v437 = vpop.permute.xlu0 %436
        %440 = vset.pattern.permute.xlu0 0
        %441 = vperm.xlu0 %440, %v433
        %v442 = vpop.permute.xlu0 %441
        %v444 = vmul.f32 %v249, %v437
        %v445 = vmul.f32 %v250, %v437
        %v446 = vmul.f32 %v251, %v442
        %v447 = vmul.f32 %v252, %v442
        %448 = vst [vmem:[%s242] sm:$0xff] %v444
        %449 = vst [vmem:[%s242 + $0x8] sm:$0xff] %v445
        %450 = vst [vmem:[%s242 + $0x10] sm:$0xff] %v446
        %451 = vst [vmem:[%s242 + $0x18] sm:$0xff] %v447
        %s452 = sand.u32 %s140, 1
        %s453 = scalar_lea.sflag [#allocation4], %s452
        %s454 = sand.u32 %s140, 1
        %s455 = smul.addr %s454, 32
        %s456 = scalar_lea.vmem [#allocation5], %s455
        // Predicated region
        $region45: #{tpu_custom_call.1} parent=39 // pred_check
          %p457 = pneg %p150
        $region46: #{tpu_custom_call.1} parent=39 // pred_check_branch
          %459 = sbr.rel (%p457) target = $region48
        $region47: #{tpu_custom_call.1} parent=39 // pred_region
          %s461 = ssub.s32 512, 512
          %462 = vsyncadd %s453, %s461
          %s463 = smul.addr %s22, 4
          %s464 = smul.addr %s463, 128
          %s465 = scalar_lea.hbm %s5, %s464
          %s466 = sshll.u32 %s456, 4
          %s467 = int_to_ptr.vmem [resolvable:$true] %s466
          %472 = dma.vmem_to_hbm [thread:$0]  %s467, 512, %s465, %s453, 256, 256, 16
        $region48: #{tpu_custom_call.1} parent=39 // pred_fallthru
          _
      $region40: #{tpu_custom_call.1} parent=5 // pred_fallthru
        _
      %p473 = scmp.le.s32.totalorder 2, %s17
      // Predicated region
      $region49: #{tpu_custom_call.1} parent=5 // pred_check
        %p474 = pneg %p473
      $region50: #{tpu_custom_call.1} parent=5 // pred_check_branch
        %476 = sbr.rel (%p474) target = $region52
      $region51: #{tpu_custom_call.1} parent=5 // pred_region
        %s477 = ssub.s32 %s17, 2
        // Predicated region
        $region53: #{tpu_custom_call.1} parent=51 // pred_check
          %p478 = pneg %p156
        $region54: #{tpu_custom_call.1} parent=51 // pred_check_branch
          %480 = sbr.rel (%p478) target = $region56
        $region55: #{tpu_custom_call.1} parent=51 // pred_region
          %s481 = sand.u32 %s141, 1
          %s482 = scalar_lea.sflag [#allocation4], %s481
          %s483 = sand.u32 %s141, 1
          %s484 = smul.addr %s483, 32
          %s485 = scalar_lea.vmem [#allocation5], %s484
          %486 = dma.done %s482, 512
        $region56: #{tpu_custom_call.1} parent=51 // pred_fallthru
          _
      $region52: #{tpu_custom_call.1} parent=5 // pred_fallthru
        _
    $region6: #{tpu_custom_call.1} parent=1 // loop_footer
      %s21 = sadd.s32 1, %s17
    $region7: #{tpu_custom_call.1} parent=1 // loop_footer_branch
      %16 = sbr.rel target = $region3
    $region8: #{tpu_custom_call.1} parent=1 // loop_exit
      _
    %487 = vsyncpa [#allocation3], 1
    %s488 = scalar_lea.sflag [#allocation3], 1
    %489 = vsyncpa %s488, 1
    %490 = vsyncpa [#allocation4], 1
    %s491 = scalar_lea.sflag [#allocation4], 1
    %492 = vsyncpa %s491, 1

</llo_original>
